<compile_context>
chip_gen: v7x
topology: tpu7x:2x2x1
jax: 0.10.0
libtpu: 0.0.40
codegen_flags: <defaults>
</compile_context>

<pallas_src>
import jax
import jax.numpy as jnp
from jax.experimental import pallas as pl
from jax.experimental.pallas import tpu as pltpu


def _normnet_kernel(x_ref,
                    w1_ref, b1_ref,
                    w2_ref, b2_ref,
                    w3_ref, b3_ref,
                    w4_ref, b4_ref,
                    out_ref):
    # x tile: (1, TB)  -- batch on lanes (lane-dense I/O)
    x = x_ref[...]

    # fc1: K=1 contraction == outer product -> VPU broadcast multiply.
    # (D,1) * (1,TB) + (D,1) -> (D, TB)
    a1 = w1_ref[...] * x + b1_ref[...]
    o1 = jnp.tanh(a1)

    # fc2: (D,D) @ (D,TB) + (D,1)   (weights in PyTorch (out,in) order, no .T)
    a2 = jnp.dot(w2_ref[...], o1,
                 preferred_element_type=jnp.float32) + b2_ref[...]
    o2 = jnp.tanh(a2)

    # fc3: (D,D) @ (D,TB) + (D,1)
    a3 = jnp.dot(w3_ref[...], o2,
                 preferred_element_type=jnp.float32) + b3_ref[...]
    o3 = jnp.tanh(a3)

    # fc4: N=1 output -> VPU multiply + cross-sublane reduce (XLU), no MXU.
    # (D,1) * (D,TB) summed over D -> (1, TB), + scalar bias
    a4 = jnp.sum(o3 * w4_ref[...], axis=0, keepdims=True) + b4_ref[...]

    out_ref[...] = a4.astype(out_ref.dtype)


def prepare_normnet_params(weights):
    """One-time (hoisted) preprocessing of PyTorch CustomLinear weights.

    Each w has shape (out_dim, in_dim + 1) with the bias column first.
    Returns arrays laid out for the (feature, batch) kernel layout. Only the
    tiny (1, D) fc4 row needs a transpose; fc2/fc3 are used untransposed.
    """
    w1, w2, w3, w4 = [jnp.asarray(w, dtype=jnp.float32) for w in weights]
    return (
        w1[:, 1:],      # (D, 1)  fc1 weight column
        w1[:, 0:1],     # (D, 1)  fc1 bias
        w2[:, 1:],      # (D, D)  fc2 weight (out, in)
        w2[:, 0:1],     # (D, 1)  fc2 bias
        w3[:, 1:],      # (D, D)  fc3 weight (out, in)
        w3[:, 0:1],     # (D, 1)  fc3 bias
        w4[:, 1:].T,    # (D, 1)  fc4 weight column
        w4[:, 0:1],     # (1, 1)  fc4 bias
    )


def _round_up(v, m):
    return ((v + m - 1) // m) * m


def _normnet_forward_impl(x, params, tb_max=1024):
    """x: (B, 1) float32; params: output of prepare_normnet_params."""
    w1c, b1, w2m, b2, w3m, b3, w4c, b4 = params
    B = x.shape[0]
    D = w1c.shape[0]

    # Lane-dense batch layout: (B, 1) -> (1, B)  (free reshape, dim of size 1)
    x_row = x.reshape(1, B).astype(jnp.float32)

    # Batch tile: always a multiple of 128 lanes so every vector load/store
    # in the kernel is an unmasked, lane-dense vld/vst.
    TB = min(_round_up(B, 128), _round_up(tb_max, 128))
    Bp = _round_up(B, TB)
    if Bp != B:
        x_row = jnp.pad(x_row, ((0, 0), (0, Bp - B)))
    n_tiles = Bp // TB

    def const_spec(shape):
        # Tiny weights stay resident in VMEM across the batch grid.
        return pl.BlockSpec(shape, lambda i: (0, 0))

    out = pl.pallas_call(
        _normnet_kernel,
        out_shape=jax.ShapeDtypeStruct((1, Bp), jnp.float32),
        grid=(n_tiles,),
        in_specs=[
            pl.BlockSpec((1, TB), lambda i: (0, i)),   # x batch tile
            const_spec((D, 1)),                        # w1 column
            const_spec((D, 1)),                        # b1
            const_spec((D, D)),                        # w2
            const_spec((D, 1)),                        # b2
            const_spec((D, D)),                        # w3
            const_spec((D, 1)),                        # b3
            const_spec((D, 1)),                        # w4 column
            const_spec((1, 1)),                        # b4
        ],
        out_specs=pl.BlockSpec((1, TB), lambda i: (0, i)),
        compiler_params=pltpu.CompilerParams(
            dimension_semantics=("parallel",)),
    )(x_row, w1c, b1, w2m, b2, w3m, b3, w4c, b4)

    # Back to the PyTorch output layout (B, 1).
    return out[:, :B].reshape(B, 1)


normnet_forward = jax.jit(_normnet_forward_impl, static_argnames=("tb_max",))


def _reference_forward(x, weights):
    """Pure-JAX reference matching the PyTorch forward exactly."""
    h = x
    for i, w in enumerate(weights):
        ones = jnp.ones((h.shape[0], 1), dtype=h.dtype)
        h_with_bias = jnp.concatenate([ones, h], axis=1)
        a = h_with_bias @ w.T
        if i < len(weights) - 1:
            h = jnp.tanh(a)
        else:
            h = a
    return h


if __name__ == "__main__":
    key = jax.random.PRNGKey(0)
    D = 32  # layer_dim

    k_x, k1, k2, k3, k4, k_x2 = jax.random.split(key, 6)

    # nn.init.normal_(weight, mean=0, std=0.1); shapes (output_dim, input_dim + bias)
    w1 = 0.1 * jax.random.normal(k1, (D, 1 + 1), dtype=jnp.float32)
    w2 = 0.1 * jax.random.normal(k2, (D, D + 1), dtype=jnp.float32)
    w3 = 0.1 * jax.random.normal(k3, (D, D + 1), dtype=jnp.float32)
    w4 = 0.1 * jax.random.normal(k4, (1, D + 1), dtype=jnp.float32)
    weights = [w1, w2, w3, w4]

    # One-time weight preprocessing (hoisted out of the forward path).
    params = prepare_normnet_params(weights)

    # --- small batch (matches the module's fc1 input_dim=1) ---
    B = 8
    x = jax.random.normal(k_x, (B, 1), dtype=jnp.float32)
    out = jax.block_until_ready(normnet_forward(x, params))
    ref = _reference_forward(x, weights)
    assert out.shape == (B, 1)
    assert jnp.allclose(out, ref, atol=1e-4, rtol=1e-4), "mismatch vs reference (B=8)"

    # --- larger batch exercising the batch grid + padding path ---
    B2 = 1000
    x2 = jax.random.normal(k_x2, (B2, 1), dtype=jnp.float32)
    out2 = jax.block_until_ready(normnet_forward(x2, params))
    ref2 = _reference_forward(x2, weights)
    assert out2.shape == (B2, 1)
    assert jnp.allclose(out2, ref2, atol=1e-4, rtol=1e-4), "mismatch vs reference (B=1000)"

    print("KERNEL_OK")
</pallas_src>

<mosaic_0001>
module attributes {stable_mosaic.version = 11 : i64} {
  func.func @_normnet_kernel(%arg0: i32, %arg1: memref<1x128xf32, #tpu.memory_space<vmem>>, %arg2: memref<32x1xf32, #tpu.memory_space<vmem>>, %arg3: memref<32x1xf32, #tpu.memory_space<vmem>>, %arg4: memref<32x32xf32, #tpu.memory_space<vmem>>, %arg5: memref<32x1xf32, #tpu.memory_space<vmem>>, %arg6: memref<32x32xf32, #tpu.memory_space<vmem>>, %arg7: memref<32x1xf32, #tpu.memory_space<vmem>>, %arg8: memref<32x1xf32, #tpu.memory_space<vmem>>, %arg9: memref<1x1xf32, #tpu.memory_space<vmem>>, %arg10: memref<1x128xf32, #tpu.memory_space<vmem>>) attributes {dimension_semantics = [#tpu.dimension_semantics<parallel>], iteration_bounds = array<i64: 1>, scalar_prefetch = 0 : i64, scratch_operands = 0 : i64, tpu.core_type = #tpu.core_type<tc>, window_params = [{transform_indices = @transform_0, window_bounds = array<i64: 1, 128>}, {pipeline_mode = #tpu.pipeline_mode<synchronous>, transform_indices = @transform_1, window_bounds = array<i64: 32, 1>}, {pipeline_mode = #tpu.pipeline_mode<synchronous>, transform_indices = @transform_2, window_bounds = array<i64: 32, 1>}, {pipeline_mode = #tpu.pipeline_mode<synchronous>, transform_indices = @transform_3, window_bounds = array<i64: 32, 32>}, {pipeline_mode = #tpu.pipeline_mode<synchronous>, transform_indices = @transform_4, window_bounds = array<i64: 32, 1>}, {pipeline_mode = #tpu.pipeline_mode<synchronous>, transform_indices = @transform_5, window_bounds = array<i64: 32, 32>}, {pipeline_mode = #tpu.pipeline_mode<synchronous>, transform_indices = @transform_6, window_bounds = array<i64: 32, 1>}, {pipeline_mode = #tpu.pipeline_mode<synchronous>, transform_indices = @transform_7, window_bounds = array<i64: 32, 1>}, {pipeline_mode = #tpu.pipeline_mode<synchronous>, transform_indices = @transform_8, window_bounds = array<i64: 1, 1>}, {transform_indices = @transform_9, window_bounds = array<i64: 1, 128>}]} {
    %c0 = arith.constant 0 : index
    %c0_0 = arith.constant 0 : index
    %0 = vector.load %arg1[%c0, %c0_0] : memref<1x128xf32, #tpu.memory_space<vmem>>, vector<1x128xf32>
    %c0_1 = arith.constant 0 : index
    %c0_2 = arith.constant 0 : index
    %1 = vector.load %arg2[%c0_1, %c0_2] : memref<32x1xf32, #tpu.memory_space<vmem>>, vector<32x1xf32>
    %2 = vector.broadcast %1 : vector<32x1xf32> to vector<32x128xf32>
    %3 = vector.broadcast %0 : vector<1x128xf32> to vector<32x128xf32>
    %4 = arith.mulf %2, %3 : vector<32x128xf32>
    %c0_3 = arith.constant 0 : index
    %c0_4 = arith.constant 0 : index
    %5 = vector.load %arg3[%c0_3, %c0_4] : memref<32x1xf32, #tpu.memory_space<vmem>>, vector<32x1xf32>
    %6 = vector.broadcast %5 : vector<32x1xf32> to vector<32x128xf32>
    %7 = arith.addf %4, %6 : vector<32x128xf32>
    %8 = math.tanh %7 : vector<32x128xf32>
    %c0_5 = arith.constant 0 : index
    %c0_6 = arith.constant 0 : index
    %9 = vector.load %arg4[%c0_5, %c0_6] : memref<32x32xf32, #tpu.memory_space<vmem>>, vector<32x32xf32>
    %cst = arith.constant dense<0.000000e+00> : vector<32x128xf32>
    %10 = tpu.matmul %9, %8, %cst {dimension_numbers = #tpu.dot_dimension_numbers<[1], [0], [0], [1], [0, 0, 1, 1], [], []>} : vector<32x32xf32>, vector<32x128xf32>, vector<32x128xf32> -> vector<32x128xf32>
    %c0_7 = arith.constant 0 : index
    %c0_8 = arith.constant 0 : index
    %11 = vector.load %arg5[%c0_7, %c0_8] : memref<32x1xf32, #tpu.memory_space<vmem>>, vector<32x1xf32>
    %12 = vector.broadcast %11 : vector<32x1xf32> to vector<32x128xf32>
    %13 = arith.addf %10, %12 : vector<32x128xf32>
    %14 = math.tanh %13 : vector<32x128xf32>
    %c0_9 = arith.constant 0 : index
    %c0_10 = arith.constant 0 : index
    %15 = vector.load %arg6[%c0_9, %c0_10] : memref<32x32xf32, #tpu.memory_space<vmem>>, vector<32x32xf32>
    %cst_11 = arith.constant dense<0.000000e+00> : vector<32x128xf32>
    %16 = tpu.matmul %15, %14, %cst_11 {dimension_numbers = #tpu.dot_dimension_numbers<[1], [0], [0], [1], [0, 0, 1, 1], [], []>} : vector<32x32xf32>, vector<32x128xf32>, vector<32x128xf32> -> vector<32x128xf32>
    %c0_12 = arith.constant 0 : index
    %c0_13 = arith.constant 0 : index
    %17 = vector.load %arg7[%c0_12, %c0_13] : memref<32x1xf32, #tpu.memory_space<vmem>>, vector<32x1xf32>
    %18 = vector.broadcast %17 : vector<32x1xf32> to vector<32x128xf32>
    %19 = arith.addf %16, %18 : vector<32x128xf32>
    %20 = math.tanh %19 : vector<32x128xf32>
    %c0_14 = arith.constant 0 : index
    %c0_15 = arith.constant 0 : index
    %21 = vector.load %arg8[%c0_14, %c0_15] : memref<32x1xf32, #tpu.memory_space<vmem>>, vector<32x1xf32>
    %22 = vector.broadcast %21 : vector<32x1xf32> to vector<32x128xf32>
    %23 = arith.mulf %20, %22 : vector<32x128xf32>
    %cst_16 = arith.constant dense<0.000000e+00> : vector<128xf32>
    %24 = vector.multi_reduction <add>, %23, %cst_16 [0] : vector<32x128xf32> to vector<128xf32>
    %25 = vector.shape_cast %24 : vector<128xf32> to vector<1x128xf32>
    %c0_17 = arith.constant 0 : index
    %c0_18 = arith.constant 0 : index
    %26 = vector.load %arg9[%c0_17, %c0_18] : memref<1x1xf32, #tpu.memory_space<vmem>>, vector<1x1xf32>
    %27 = vector.broadcast %26 : vector<1x1xf32> to vector<1x128xf32>
    %28 = arith.addf %25, %27 : vector<1x128xf32>
    %c0_19 = arith.constant 0 : index
    %c0_20 = arith.constant 0 : index
    %29 = vector.load %arg10[%c0_19, %c0_20] : memref<1x128xf32, #tpu.memory_space<vmem>>, vector<1x128xf32>
    tpu.vector_store %arg10[%c0_19, %c0_20], %28 {strides = array<i32>} : memref<1x128xf32, #tpu.memory_space<vmem>>, vector<1x128xf32>,
    return
  }
  func.func @transform_0(%arg0: i32) -> (i32, i32) {
    %c0_i32 = arith.constant 0 : i32
    %c0_i32_0 = arith.constant 0 : i32
    return %c0_i32, %arg0 : i32, i32
  }
  func.func @transform_1(%arg0: i32) -> (i32, i32) {
    %c0_i32 = arith.constant 0 : i32
    %c0_i32_0 = arith.constant 0 : i32
    %c0_i32_1 = arith.constant 0 : i32
    return %c0_i32, %c0_i32_0 : i32, i32
  }
  func.func @transform_2(%arg0: i32) -> (i32, i32) {
    %c0_i32 = arith.constant 0 : i32
    %c0_i32_0 = arith.constant 0 : i32
    %c0_i32_1 = arith.constant 0 : i32
    return %c0_i32, %c0_i32_0 : i32, i32
  }
  func.func @transform_3(%arg0: i32) -> (i32, i32) {
    %c0_i32 = arith.constant 0 : i32
    %c0_i32_0 = arith.constant 0 : i32
    %c0_i32_1 = arith.constant 0 : i32
    return %c0_i32, %c0_i32_0 : i32, i32
  }
  func.func @transform_4(%arg0: i32) -> (i32, i32) {
    %c0_i32 = arith.constant 0 : i32
    %c0_i32_0 = arith.constant 0 : i32
    %c0_i32_1 = arith.constant 0 : i32
    return %c0_i32, %c0_i32_0 : i32, i32
  }
  func.func @transform_5(%arg0: i32) -> (i32, i32) {
    %c0_i32 = arith.constant 0 : i32
    %c0_i32_0 = arith.constant 0 : i32
    %c0_i32_1 = arith.constant 0 : i32
    return %c0_i32, %c0_i32_0 : i32, i32
  }
  func.func @transform_6(%arg0: i32) -> (i32, i32) {
    %c0_i32 = arith.constant 0 : i32
    %c0_i32_0 = arith.constant 0 : i32
    %c0_i32_1 = arith.constant 0 : i32
    return %c0_i32, %c0_i32_0 : i32, i32
  }
  func.func @transform_7(%arg0: i32) -> (i32, i32) {
    %c0_i32 = arith.constant 0 : i32
    %c0_i32_0 = arith.constant 0 : i32
    %c0_i32_1 = arith.constant 0 : i32
    return %c0_i32, %c0_i32_0 : i32, i32
  }
  func.func @transform_8(%arg0: i32) -> (i32, i32) {
    %c0_i32 = arith.constant 0 : i32
    %c0_i32_0 = arith.constant 0 : i32
    %c0_i32_1 = arith.constant 0 : i32
    return %c0_i32, %c0_i32_0 : i32, i32
  }
  func.func @transform_9(%arg0: i32) -> (i32, i32) {
    %c0_i32 = arith.constant 0 : i32
    %c0_i32_0 = arith.constant 0 : i32
    return %c0_i32, %arg0 : i32, i32
  }
}

</mosaic_0001>

<llo_original>
// kernel: _normnet_forward_impl.1
$region0: #{_normnet_forward_impl.1}
  #allocation0 [shape = 'u32[]', space=smem, size = 0x4, offset = 0x4, fixed_abs, tag = 'smem constant byte address 0x4 - core index']
  #allocation1 [shape = 'u32[144,128]{1,0:T(1,128)}', space=vmem, size = 0x12000, scoped, tag = 'internal scratch']
  #allocation2 [shape = 'f32[1,1]{1,0:T(1,128)S(1)}', space=vmem, size = 0x200, scoped, tag = 'scoped memory for _normnet_forward_impl.1']
  %s0 = inlined_call_operand.vmem [shape: f32[1,128], index: 0, kind: input, shape index: {}]
  %s1 = inlined_call_operand.vmem [shape: f32[32,1], index: 1, kind: input, shape index: {}]
  %s2 = inlined_call_operand.vmem [shape: f32[32,1], index: 2, kind: input, shape index: {}]
  %s3 = inlined_call_operand.vmem [shape: f32[32,32], index: 3, kind: input, shape index: {}]
  %s4 = inlined_call_operand.vmem [shape: f32[32,1], index: 4, kind: input, shape index: {}]
  %s5 = inlined_call_operand.vmem [shape: f32[32,32], index: 5, kind: input, shape index: {}]
  %s6 = inlined_call_operand.vmem [shape: f32[32,1], index: 6, kind: input, shape index: {}]
  %s7 = inlined_call_operand.vmem [shape: f32[32,1], index: 7, kind: input, shape index: {}]
  %s8 = inlined_call_operand.<no memory space> [shape: f32[1,1], index: 8, kind: input, shape index: {}]
  %s9 = inlined_call_operand.vmem [shape: f32[1,128], index: 9, kind: output, shape index: {}]
  %s10 = sld [smem:[#allocation0]]
  $region46: #{_normnet_forward_impl.1} parent=0
    _
  %s12 = ssub.s32 1, %s10
  %s13 = scalar_select 0, %s12, %s10
  %v14 = vstv %s8
  %15 = vst [vmem:[#allocation2] sm:$0x1] %v14
  // Predicated region
  $region2: #{_normnet_forward_impl.1} parent=0 // pred_check
    _
  $region3: #{_normnet_forward_impl.1} parent=0 // pred_check_branch
    %17 = sbr.rel (0) target = $region5
  $region4: #{_normnet_forward_impl.1} parent=0 // pred_region
    _
  $region5: #{_normnet_forward_impl.1} parent=0 // pred_fallthru
    _
  // Predicated region
  $region6: #{_normnet_forward_impl.1} parent=0 // pred_check
    _
  $region7: #{_normnet_forward_impl.1} parent=0 // pred_check_branch
    %19 = sbr.rel (0) target = $region9
  $region8: #{_normnet_forward_impl.1} parent=0 // pred_region
    _
  $region9: #{_normnet_forward_impl.1} parent=0 // pred_fallthru
    _
  // Predicated region
  $region10: #{_normnet_forward_impl.1} parent=0 // pred_check
    _
  $region11: #{_normnet_forward_impl.1} parent=0 // pred_check_branch
    %21 = sbr.rel (0) target = $region13
  $region12: #{_normnet_forward_impl.1} parent=0 // pred_region
    _
  $region13: #{_normnet_forward_impl.1} parent=0 // pred_fallthru
    _
  // Predicated region
  $region14: #{_normnet_forward_impl.1} parent=0 // pred_check
    _
  $region15: #{_normnet_forward_impl.1} parent=0 // pred_check_branch
    %23 = sbr.rel (0) target = $region17
  $region16: #{_normnet_forward_impl.1} parent=0 // pred_region
    _
  $region17: #{_normnet_forward_impl.1} parent=0 // pred_fallthru
    _
  // Predicated region
  $region18: #{_normnet_forward_impl.1} parent=0 // pred_check
    _
  $region19: #{_normnet_forward_impl.1} parent=0 // pred_check_branch
    %25 = sbr.rel (0) target = $region21
  $region20: #{_normnet_forward_impl.1} parent=0 // pred_region
    _
  $region21: #{_normnet_forward_impl.1} parent=0 // pred_fallthru
    _
  // Predicated region
  $region22: #{_normnet_forward_impl.1} parent=0 // pred_check
    _
  $region23: #{_normnet_forward_impl.1} parent=0 // pred_check_branch
    %27 = sbr.rel (0) target = $region25
  $region24: #{_normnet_forward_impl.1} parent=0 // pred_region
    _
  $region25: #{_normnet_forward_impl.1} parent=0 // pred_fallthru
    _
  // Predicated region
  $region26: #{_normnet_forward_impl.1} parent=0 // pred_check
    _
  $region27: #{_normnet_forward_impl.1} parent=0 // pred_check_branch
    %29 = sbr.rel (0) target = $region29
  $region28: #{_normnet_forward_impl.1} parent=0 // pred_region
    _
  $region29: #{_normnet_forward_impl.1} parent=0 // pred_fallthru
    _
  // Predicated region
  $region30: #{_normnet_forward_impl.1} parent=0 // pred_check
    _
  $region31: #{_normnet_forward_impl.1} parent=0 // pred_check_branch
    %31 = sbr.rel (0) target = $region33
  $region32: #{_normnet_forward_impl.1} parent=0 // pred_region
    _
  $region33: #{_normnet_forward_impl.1} parent=0 // pred_fallthru
    _
  // Predicated region
  $region34: #{_normnet_forward_impl.1} parent=0 // pred_check
    _
  $region35: #{_normnet_forward_impl.1} parent=0 // pred_check_branch
    %33 = sbr.rel (0) target = $region37
  $region36: #{_normnet_forward_impl.1} parent=0 // pred_region
    _
  $region37: #{_normnet_forward_impl.1} parent=0 // pred_fallthru
    _
  %v34 = vld [vmem:[%s0] sm:$0x1]
  %v35 = vld [vmem:[%s1] sm:$0xff]
  %v36 = vld [vmem:[%s1 + $0x8] sm:$0xff]
  %v37 = vld [vmem:[%s1 + $0x10] sm:$0xff]
  %v38 = vld [vmem:[%s1 + $0x18] sm:$0xff]
  %40 = vset.pattern.permute.xlu0 0
  %41 = vperm.xlu0 %40, %v35
  %v42 = vpop.permute.xlu0 %41
  %45 = vset.pattern.permute.xlu0 0
  %46 = vperm.xlu0 %45, %v36
  %v47 = vpop.permute.xlu0 %46
  %50 = vset.pattern.permute.xlu0 0
  %51 = vperm.xlu0 %50, %v37
  %v52 = vpop.permute.xlu0 %51
  %55 = vset.pattern.permute.xlu0 0
  %56 = vperm.xlu0 %55, %v38
  %v57 = vpop.permute.xlu0 %56
  %v60 = vlaneseq
  %v61 = vshrl.u32 %v60, 7
  %v62 = vsub.s32 0, %v61
  %v63 = vrot.slane %v34, %v62
  %v65 = vmul.f32 %v42, %v63
  %v66 = vmul.f32 %v47, %v63
  %v67 = vmul.f32 %v52, %v63
  %v68 = vmul.f32 %v57, %v63
  %v69 = vld [vmem:[%s2] sm:$0xff]
  %v70 = vld [vmem:[%s2 + $0x8] sm:$0xff]
  %v71 = vld [vmem:[%s2 + $0x10] sm:$0xff]
  %v72 = vld [vmem:[%s2 + $0x18] sm:$0xff]
  %74 = vset.pattern.permute.xlu0 0
  %75 = vperm.xlu0 %74, %v69
  %v76 = vpop.permute.xlu0 %75
  %79 = vset.pattern.permute.xlu0 0
  %80 = vperm.xlu0 %79, %v70
  %v81 = vpop.permute.xlu0 %80
  %84 = vset.pattern.permute.xlu0 0
  %85 = vperm.xlu0 %84, %v71
  %v86 = vpop.permute.xlu0 %85
  %89 = vset.pattern.permute.xlu0 0
  %90 = vperm.xlu0 %89, %v72
  %v91 = vpop.permute.xlu0 %90
  %v93 = vadd.f32 %v65, %v76
  %v94 = vadd.f32 %v66, %v81
  %v95 = vadd.f32 %v67, %v86
  %v96 = vadd.f32 %v68, %v91
  %v97 = vtanh.pop %v93
  %v98 = vtanh.pop %v94
  %v99 = vtanh.pop %v95
  %v100 = vtanh.pop %v96
  %v101 = vld [vmem:[%s3] sm:$0xff]
  %v102 = vld [vmem:[%s3 + $0x8] sm:$0xff]
  %v103 = vld [vmem:[%s3 + $0x10] sm:$0xff]
  %v104 = vld [vmem:[%s3 + $0x18] sm:$0xff]
  %v105 = vld [vmem:[%s4] sm:$0xff]
  %v106 = vld [vmem:[%s4 + $0x8] sm:$0xff]
  %v107 = vld [vmem:[%s4 + $0x10] sm:$0xff]
  %v108 = vld [vmem:[%s4 + $0x18] sm:$0xff]
  %110 = vset.pattern.permute.xlu0 0
  %111 = vperm.xlu0 %110, %v105
  %v112 = vpop.permute.xlu0 %111
  %115 = vset.pattern.permute.xlu0 0
  %116 = vperm.xlu0 %115, %v106
  %v117 = vpop.permute.xlu0 %116
  %120 = vset.pattern.permute.xlu0 0
  %121 = vperm.xlu0 %120, %v107
  %v122 = vpop.permute.xlu0 %121
  %125 = vset.pattern.permute.xlu0 0
  %126 = vperm.xlu0 %125, %v108
  %v127 = vpop.permute.xlu0 %126
  %vm129 = vcmask 261120
  %v131 = vsel %vm129, %v101, 0
  %v134 = vsel %vm129, %v102, 0
  %v137 = vsel %vm129, %v103, 0
  %v140 = vsel %vm129, %v104, 0
  %142 = vmatprep.subr.mxu0 0.0
  %143 = vmatpush1.msra.mxu0 %v97
  %144 = vmatprep.subr.mxu0 0.0
  %145 = vmatpush1.msra.mxu0 %v98
  %146 = vmatprep.subr.mxu0 0.0
  %147 = vmatpush1.msra.mxu0 %v99
  %148 = vmatprep.subr.mxu0 0.0
  %149 = vmatpush1.msra.mxu0 %v100
  %150 = vmatprep.subr.mxu0 0.0
  %151 = vmatpush1.msra.mxu0 0.0
  %152 = vmatprep.subr.mxu0 0.0
  %153 = vmatpush1.msra.mxu0 0.0
  %154 = vmatprep.subr.mxu0 0.0
  %155 = vmatpush1.msra.mxu0 0.0
  %156 = vmatprep.subr.mxu0 0.0
  %157 = vmatpush1.msra.mxu0 0.0
  %158 = vmatprep.subr.mxu0 0.0
  %159 = vmatpush1.msra.mxu0 0.0
  %160 = vmatprep.subr.mxu0 0.0
  %161 = vmatpush1.msra.mxu0 0.0
  %162 = vmatprep.subr.mxu0 0.0
  %163 = vmatpush1.msra.mxu0 0.0
  %164 = vmatprep.subr.mxu0 0.0
  %165 = vmatpush1.msra.mxu0 0.0
  %166 = vmatprep.subr.mxu0 0.0
  %167 = vmatpush1.msra.mxu0 0.0
  %168 = vmatprep.subr.mxu0 0.0
  %169 = vmatpush1.msra.mxu0 0.0
  %170 = vmatprep.subr.mxu0 0.0
  %171 = vmatpush1.msra.mxu0 0.0
  %172 = vmatprep.subr.mxu0 0.0
  %173 = vmatpush1.msra.mxu0 0.0
  %174 = vmatprep.subr.mxu0 0.0
  %175 = vmatpush1.msra.mxu0 0.0
  %176 = vmatprep.subr.mxu0 0.0
  %177 = vmatpush1.msra.mxu0 0.0
  %178 = vmatprep.subr.mxu0 0.0
  %179 = vmatpush1.msra.mxu0 0.0
  %180 = vmatprep.subr.mxu0 0.0
  %181 = vmatpush1.msra.mxu0 0.0
  %182 = vmatprep.subr.mxu0 0.0
  %183 = vmatpush1.msra.mxu0 0.0
  %184 = vmatprep.subr.mxu0 0.0
  %185 = vmatpush1.msra.mxu0 0.0
  %186 = vmatprep.subr.mxu0 0.0
  %187 = vmatpush1.msra.mxu0 0.0
  %188 = vmatprep.subr.mxu0 0.0
  %189 = vmatpush1.msra.mxu0 0.0
  %190 = vmatprep.subr.mxu0 0.0
  %191 = vmatpush1.msra.mxu0 0.0
  %192 = vmatprep.subr.mxu0 0.0
  %193 = vmatpush1.msra.mxu0 0.0
  %194 = vmatprep.subr.mxu0 0.0
  %195 = vmatpush1.msra.mxu0 0.0
  %196 = vmatprep.subr.mxu0 0.0
  %197 = vmatpush1.msra.mxu0 0.0
  %198 = vmatprep.subr.mxu0 0.0
  %199 = vmatpush1.msra.mxu0 0.0
  %200 = vmatprep.subr.mxu0 0.0
  %201 = vmatpush1.msra.mxu0 0.0
  %202 = vmatprep.subr.mxu0 0.0
  %203 = vmatpush1.msra.mxu0 0.0
  %204 = vmatprep.subr.mxu0 0.0
  %205 = vmatpush1.msra.mxu0 0.0
  %206 = vmatprep.mubr.f32.mxu0 0.0
  %207 = vmatmul.mubr.f32.gmra.mrb[0].mxu0 %v131
  %v208 = vpop.f32.mrb[0].mxu0
  %v209 = vadd.f32 %v112, %v208
  %v210 = vpop.f32.mrb[0].mxu0
  %211 = vmatprep.mubr.f32.mxu0 0.0
  %212 = vmatmul.mubr.f32.gmra.mrb[0].mxu0 %v134
  %v213 = vpop.f32.mrb[0].mxu0
  %v214 = vadd.f32 %v117, %v213
  %v215 = vpop.f32.mrb[0].mxu0
  %216 = vmatprep.mubr.f32.mxu0 0.0
  %217 = vmatmul.mubr.f32.gmra.mrb[0].mxu0 %v137
  %v218 = vpop.f32.mrb[0].mxu0
  %v219 = vadd.f32 %v122, %v218
  %v220 = vpop.f32.mrb[0].mxu0
  %221 = vmatprep.mubr.f32.mxu0 0.0
  %222 = vmatmul.mubr.f32.gmra.mrb[0].mxu0 %v140
  %v223 = vpop.f32.mrb[0].mxu0
  %v224 = vadd.f32 %v127, %v223
  %v225 = vpop.f32.mrb[0].mxu0
  %226 = vdwg.mxu0
  %v227 = vtanh.pop %v209
  %v228 = vtanh.pop %v214
  %v229 = vtanh.pop %v219
  %v230 = vtanh.pop %v224
  %v231 = vld [vmem:[%s5] sm:$0xff]
  %v232 = vld [vmem:[%s5 + $0x8] sm:$0xff]
  %v233 = vld [vmem:[%s5 + $0x10] sm:$0xff]
  %v234 = vld [vmem:[%s5 + $0x18] sm:$0xff]
  %v235 = vld [vmem:[%s6] sm:$0xff]
  %v236 = vld [vmem:[%s6 + $0x8] sm:$0xff]
  %v237 = vld [vmem:[%s6 + $0x10] sm:$0xff]
  %v238 = vld [vmem:[%s6 + $0x18] sm:$0xff]
  %240 = vset.pattern.permute.xlu0 0
  %241 = vperm.xlu0 %240, %v235
  %v242 = vpop.permute.xlu0 %241
  %245 = vset.pattern.permute.xlu0 0
  %246 = vperm.xlu0 %245, %v236
  %v247 = vpop.permute.xlu0 %246
  %250 = vset.pattern.permute.xlu0 0
  %251 = vperm.xlu0 %250, %v237
  %v252 = vpop.permute.xlu0 %251
  %255 = vset.pattern.permute.xlu0 0
  %256 = vperm.xlu0 %255, %v238
  %v257 = vpop.permute.xlu0 %256
  %v260 = vsel %vm129, %v231, 0
  %v263 = vsel %vm129, %v232, 0
  %v266 = vsel %vm129, %v233, 0
  %v269 = vsel %vm129, %v234, 0
  %271 = vmatprep.subr.mxu0 0.0
  %272 = vmatpush1.msra.mxu0 %v227
  %273 = vmatprep.subr.mxu0 0.0
  %274 = vmatpush1.msra.mxu0 %v228
  %275 = vmatprep.subr.mxu0 0.0
  %276 = vmatpush1.msra.mxu0 %v229
  %277 = vmatprep.subr.mxu0 0.0
  %278 = vmatpush1.msra.mxu0 %v230
  %279 = vmatprep.subr.mxu0 0.0
  %280 = vmatpush1.msra.mxu0 0.0
  %281 = vmatprep.subr.mxu0 0.0
  %282 = vmatpush1.msra.mxu0 0.0
  %283 = vmatprep.subr.mxu0 0.0
  %284 = vmatpush1.msra.mxu0 0.0
  %285 = vmatprep.subr.mxu0 0.0
  %286 = vmatpush1.msra.mxu0 0.0
  %287 = vmatprep.subr.mxu0 0.0
  %288 = vmatpush1.msra.mxu0 0.0
  %289 = vmatprep.subr.mxu0 0.0
  %290 = vmatpush1.msra.mxu0 0.0
  %291 = vmatprep.subr.mxu0 0.0
  %292 = vmatpush1.msra.mxu0 0.0
  %293 = vmatprep.subr.mxu0 0.0
  %294 = vmatpush1.msra.mxu0 0.0
  %295 = vmatprep.subr.mxu0 0.0
  %296 = vmatpush1.msra.mxu0 0.0
  %297 = vmatprep.subr.mxu0 0.0
  %298 = vmatpush1.msra.mxu0 0.0
  %299 = vmatprep.subr.mxu0 0.0
  %300 = vmatpush1.msra.mxu0 0.0
  %301 = vmatprep.subr.mxu0 0.0
  %302 = vmatpush1.msra.mxu0 0.0
  %303 = vmatprep.subr.mxu0 0.0
  %304 = vmatpush1.msra.mxu0 0.0
  %305 = vmatprep.subr.mxu0 0.0
  %306 = vmatpush1.msra.mxu0 0.0
  %307 = vmatprep.subr.mxu0 0.0
  %308 = vmatpush1.msra.mxu0 0.0
  %309 = vmatprep.subr.mxu0 0.0
  %310 = vmatpush1.msra.mxu0 0.0
  %311 = vmatprep.subr.mxu0 0.0
  %312 = vmatpush1.msra.mxu0 0.0
  %313 = vmatprep.subr.mxu0 0.0
  %314 = vmatpush1.msra.mxu0 0.0
  %315 = vmatprep.subr.mxu0 0.0
  %316 = vmatpush1.msra.mxu0 0.0
  %317 = vmatprep.subr.mxu0 0.0
  %318 = vmatpush1.msra.mxu0 0.0
  %319 = vmatprep.subr.mxu0 0.0
  %320 = vmatpush1.msra.mxu0 0.0
  %321 = vmatprep.subr.mxu0 0.0
  %322 = vmatpush1.msra.mxu0 0.0
  %323 = vmatprep.subr.mxu0 0.0
  %324 = vmatpush1.msra.mxu0 0.0
  %325 = vmatprep.subr.mxu0 0.0
  %326 = vmatpush1.msra.mxu0 0.0
  %327 = vmatprep.subr.mxu0 0.0
  %328 = vmatpush1.msra.mxu0 0.0
  %329 = vmatprep.subr.mxu0 0.0
  %330 = vmatpush1.msra.mxu0 0.0
  %331 = vmatprep.subr.mxu0 0.0
  %332 = vmatpush1.msra.mxu0 0.0
  %333 = vmatprep.subr.mxu0 0.0
  %334 = vmatpush1.msra.mxu0 0.0
  %335 = vmatprep.mubr.f32.mxu0 0.0
  %336 = vmatmul.mubr.f32.gmra.mrb[0].mxu0 %v260
  %v337 = vpop.f32.mrb[0].mxu0
  %v338 = vadd.f32 %v242, %v337
  %v339 = vpop.f32.mrb[0].mxu0
  %340 = vmatprep.mubr.f32.mxu0 0.0
  %341 = vmatmul.mubr.f32.gmra.mrb[0].mxu0 %v263
  %v342 = vpop.f32.mrb[0].mxu0
  %v343 = vadd.f32 %v247, %v342
  %v344 = vpop.f32.mrb[0].mxu0
  %345 = vmatprep.mubr.f32.mxu0 0.0
  %346 = vmatmul.mubr.f32.gmra.mrb[0].mxu0 %v266
  %v347 = vpop.f32.mrb[0].mxu0
  %v348 = vadd.f32 %v252, %v347
  %v349 = vpop.f32.mrb[0].mxu0
  %350 = vmatprep.mubr.f32.mxu0 0.0
  %351 = vmatmul.mubr.f32.gmra.mrb[0].mxu0 %v269
  %v352 = vpop.f32.mrb[0].mxu0
  %v353 = vadd.f32 %v257, %v352
  %v354 = vpop.f32.mrb[0].mxu0
  %355 = vdwg.mxu0
  %v356 = vtanh.pop %v338
  %v357 = vtanh.pop %v343
  %v358 = vtanh.pop %v348
  %v359 = vtanh.pop %v353
  %v360 = vld [vmem:[%s7] sm:$0xff]
  %v361 = vld [vmem:[%s7 + $0x8] sm:$0xff]
  %v362 = vld [vmem:[%s7 + $0x10] sm:$0xff]
  %v363 = vld [vmem:[%s7 + $0x18] sm:$0xff]
  %365 = vset.pattern.permute.xlu0 0
  %366 = vperm.xlu0 %365, %v360
  %v367 = vpop.permute.xlu0 %366
  %370 = vset.pattern.permute.xlu0 0
  %371 = vperm.xlu0 %370, %v361
  %v372 = vpop.permute.xlu0 %371
  %375 = vset.pattern.permute.xlu0 0
  %376 = vperm.xlu0 %375, %v362
  %v377 = vpop.permute.xlu0 %376
  %380 = vset.pattern.permute.xlu0 0
  %381 = vperm.xlu0 %380, %v363
  %v382 = vpop.permute.xlu0 %381
  %v384 = vmul.f32 %v356, %v367
  %v385 = vmul.f32 %v357, %v372
  %v386 = vmul.f32 %v358, %v377
  %v387 = vmul.f32 %v359, %v382
  %v388 = vadd.f32 %v384, %v385
  %v389 = vadd.f32 %v388, %v386
  %v390 = vadd.f32 %v389, %v387
  %v391 = vrot.slane %v390, 4
  %v392 = vadd.f32 %v390, %v391
  %v393 = vrot.slane %v392, 2
  %v394 = vadd.f32 %v392, %v393
  %v395 = vrot.slane %v394, 1
  %v396 = vadd.f32 %v394, %v395
  %v397 = vld [vmem:[#allocation2] sm:$0x1]
  %399 = vset.pattern.permute.xlu0 0
  %400 = vperm.xlu0 %399, %v397
  %v401 = vpop.permute.xlu0 %400
  %v403 = vlaneseq
  %v404 = vshrl.u32 %v403, 7
  %v405 = vsub.s32 0, %v404
  %v406 = vrot.slane %v401, %v405
  %v407 = vadd.f32 %v396, %v406
  %408 = vst [vmem:[%s9] sm:$0x1] %v407
  // Predicated region
  $region38: #{_normnet_forward_impl.1} parent=0 // pred_check
    _
  $region39: #{_normnet_forward_impl.1} parent=0 // pred_check_branch
    %410 = sbr.rel (0) target = $region41
  $region40: #{_normnet_forward_impl.1} parent=0 // pred_region
    _
  $region41: #{_normnet_forward_impl.1} parent=0 // pred_fallthru
    _
  // Predicated region
  $region42: #{_normnet_forward_impl.1} parent=0 // pred_check
    _
  $region43: #{_normnet_forward_impl.1} parent=0 // pred_check_branch
    %412 = sbr.rel (0) target = $region45
  $region44: #{_normnet_forward_impl.1} parent=0 // pred_region
    _
  $region45: #{_normnet_forward_impl.1} parent=0 // pred_fallthru
    _

</llo_original>
